<compile_context>
chip_gen: v5e
topology: v5e:2x2
jax: 0.10.0
libtpu: 0.0.40
codegen_flags: <defaults>
</compile_context>

<pallas_src>
import functools

import jax
import jax.numpy as jnp
from jax.experimental import pallas as pl
from jax.experimental.pallas import tpu as pltpu

HIDDEN = 64            # module semantics: hidden width of 64
_NEG_BIG = -1e30       # bias for padded logit columns -> softmax prob exactly 0
_MIN_SPLIT_ROWS = 256  # below this, don't split the batch just for the 2nd TensorCore


def actor_kernel(x_ref, w1_ref, b1_ref, w2_ref, b2_ref, w3_ref, b3_ref, o_ref,
                 *, matmul_dtype, approx_recip):
    # dense1 + relu  (operands already in matmul_dtype; f32 accumulation)
    h1 = jnp.dot(x_ref[...], w1_ref[...],
                 preferred_element_type=jnp.float32) + b1_ref[...]
    h1 = jnp.maximum(h1, 0.0)
    # dense2 + relu
    h2 = jnp.dot(h1.astype(matmul_dtype), w2_ref[...],
                 preferred_element_type=jnp.float32) + b2_ref[...]
    h2 = jnp.maximum(h2, 0.0)
    # dense3 (logits over the output width; padded columns carry a -1e30 bias)
    logits = jnp.dot(h2.astype(matmul_dtype), w3_ref[...],
                     preferred_element_type=jnp.float32) + b3_ref[...]
    # numerically stable softmax along the last axis (padded columns -> exp(...) == 0)
    m = jnp.max(logits, axis=-1, keepdims=True)
    e = jnp.exp(logits - m)
    denom = jnp.sum(e, axis=-1, keepdims=True)
    o_ref[...] = (e * pl.reciprocal(denom, approx=approx_recip)).astype(o_ref.dtype)


def _round_up(x, m):
    return ((x + m - 1) // m) * m


def _cdiv(a, b):
    return -(-a // b)


def _vmem_estimate_bytes(tb, input_dim, hidden_pad, out_w, in_bytes, out_bytes):
    """Conservative double-buffered working-set estimate for the pallas_call."""
    obs_buf = 2 * tb * input_dim * in_bytes
    out_buf = 2 * tb * out_w * out_bytes
    w_buf = 2 * (input_dim * hidden_pad + hidden_pad * hidden_pad
                 + hidden_pad * out_w) * in_bytes
    b_buf = 2 * (2 * hidden_pad + out_w) * 4
    act = 3 * tb * max(hidden_pad, out_w) * 4      # h1 / h2 / logits in f32
    return obs_buf + out_buf + w_buf + b_buf + act


def actor_network_forward(obs, params, *, matmul_dtype=jnp.bfloat16,
                          approx_recip=True, block_batch=2048,
                          out_dtype=None, lane_dense_output=True,
                          return_padded=False):
    """obs: (B, input_dim) float32; params: dict of (w1,b1,w2,b2,w3,b3)."""
    w1, b1, w2, b2, w3, b3 = (params["w1"], params["b1"], params["w2"],
                              params["b2"], params["w3"], params["b3"])
    B, input_dim = obs.shape
    hidden = w1.shape[1]
    out_dim = w3.shape[1]

    matmul_dtype = jnp.dtype(matmul_dtype)
    if out_dtype is None:
        # fast path writes bf16 (halves HBM writeback); exact path stays f32
        out_dtype = jnp.bfloat16 if matmul_dtype == jnp.dtype(jnp.bfloat16) else jnp.float32
    out_dtype = jnp.dtype(out_dtype)

    # ---- hidden dim padded to a full 128-lane vreg (exact: ReLU(0)=0, zeros add 0) ----
    hidden_pad = int(_round_up(hidden, 128))
    if hidden_pad != hidden:
        dh = hidden_pad - hidden
        w1 = jnp.pad(w1, ((0, 0), (0, dh)))
        b1 = jnp.pad(b1, ((0, 0), (0, dh)))
        w2 = jnp.pad(w2, ((0, dh), (0, dh)))
        b2 = jnp.pad(b2, ((0, 0), (0, dh)))
        w3 = jnp.pad(w3, ((0, dh), (0, 0)))

    # ---- output width: lane-dense (multiple of 128) by default; padded cols -> prob 0 ----
    out_w = int(_round_up(out_dim, 128)) if lane_dense_output else out_dim
    if out_w != out_dim:
        w3 = jnp.pad(w3, ((0, 0), (0, out_w - out_dim)))
        b3 = jnp.pad(b3, ((0, 0), (0, out_w - out_dim)), constant_values=_NEG_BIG)

    # ---- pre-cast MXU operands once in the wrapper (biases stay f32 for VPU math) ----
    w1 = w1.astype(matmul_dtype)
    w2 = w2.astype(matmul_dtype)
    w3 = w3.astype(matmul_dtype)
    b1 = b1.astype(jnp.float32)
    b2 = b2.astype(jnp.float32)
    b3 = b3.astype(jnp.float32)
    obs = obs.astype(matmul_dtype)

    # ---- batch tiling: large tiles to amortize per-step overhead, but >=2 grid steps
    #      for mid/large batches so both v7x TensorCores get work ----
    b8 = int(_round_up(max(B, 1), 8))
    n_tiles = max(1, _cdiv(b8, block_batch))
    if n_tiles == 1 and b8 >= 2 * _MIN_SPLIT_ROWS:
        n_tiles = 2
    tb = int(_round_up(_cdiv(b8, n_tiles), 8))
    padded_b = tb * n_tiles
    if padded_b != B:
        obs = jnp.pad(obs, ((0, padded_b - B), (0, 0)))

    # ---- scoped VMEM limit derived from the actual working set (valid on v7x 64 MiB) ----
    est = _vmem_estimate_bytes(tb, input_dim, hidden_pad, out_w,
                               matmul_dtype.itemsize, out_dtype.itemsize)
    vmem_limit = int(min(64 * 1024 * 1024, max(32 * 1024 * 1024, 2 * est + (4 << 20))))

    kernel = functools.partial(actor_kernel, matmul_dtype=matmul_dtype,
                               approx_recip=approx_recip)

    out = pl.pallas_call(
        kernel,
        out_shape=jax.ShapeDtypeStruct((padded_b, out_w), out_dtype),
        grid=(n_tiles,),
        in_specs=[
            pl.BlockSpec((tb, input_dim), lambda i: (i, 0)),          # obs tile (walks batch)
            pl.BlockSpec((input_dim, hidden_pad), lambda i: (0, 0)),  # w1 (resident)
            pl.BlockSpec((1, hidden_pad), lambda i: (0, 0)),          # b1
            pl.BlockSpec((hidden_pad, hidden_pad), lambda i: (0, 0)), # w2
            pl.BlockSpec((1, hidden_pad), lambda i: (0, 0)),          # b2
            pl.BlockSpec((hidden_pad, out_w), lambda i: (0, 0)),      # w3
            pl.BlockSpec((1, out_w), lambda i: (0, 0)),               # b3
        ],
        out_specs=pl.BlockSpec((tb, out_w), lambda i: (i, 0)),
        compiler_params=pltpu.CompilerParams(
            dimension_semantics=("parallel",),
            vmem_limit_bytes=vmem_limit,
        ),
    )(obs, w1, b1, w2, b2, w3, b3)

    if return_padded:
        # Caller consumes the padded slab directly (skips an extra HBM read+write pass).
        # Rows >= B and columns >= out_dim are padding and must be ignored/masked.
        return out
    return out[:B, :out_dim]


def init_params(key, input_dim, out_dim):
    """Deterministic init mimicking PyTorch Linear default (U[-1/sqrt(fan_in), +1/sqrt(fan_in)])."""
    ks = jax.random.split(key, 6)

    def lin(kw, kb, fan_in, fan_out):
        bound = 1.0 / jnp.sqrt(float(fan_in))
        w = jax.random.uniform(kw, (fan_in, fan_out), jnp.float32, -bound, bound)
        b = jax.random.uniform(kb, (1, fan_out), jnp.float32, -bound, bound)
        return w, b

    w1, b1 = lin(ks[0], ks[1], input_dim, HIDDEN)
    w2, b2 = lin(ks[2], ks[3], HIDDEN, HIDDEN)
    w3, b3 = lin(ks[4], ks[5], HIDDEN, out_dim)
    return {"w1": w1, "b1": b1, "w2": w2, "b2": b2, "w3": w3, "b3": b3}


def actor_network_ref(obs, p):
    h1 = jnp.maximum(obs @ p["w1"] + p["b1"], 0.0)
    h2 = jnp.maximum(h1 @ p["w2"] + p["b2"], 0.0)
    logits = h2 @ p["w3"] + p["b3"]
    return jax.nn.softmax(logits, axis=-1)


if __name__ == "__main__":
    key = jax.random.PRNGKey(0)
    k_obs, k_params = jax.random.split(key)

    batch, input_dim, out_dim = 8, 32, 8
    obs = jax.random.normal(k_obs, (batch, input_dim), jnp.float32)
    params = init_params(k_params, input_dim, out_dim)
    ref = actor_network_ref(obs, params)

    # 1) exact-precision path: tight check against the pure-JAX (PyTorch-equivalent) reference
    out_f32 = jax.block_until_ready(
        actor_network_forward(obs, params, matmul_dtype=jnp.float32, approx_recip=False))
    assert out_f32.shape == (batch, out_dim)
    assert out_f32.dtype == jnp.float32
    assert jnp.allclose(out_f32, ref, atol=1e-5, rtol=1e-5), "f32 path mismatch vs reference"
    assert jnp.allclose(jnp.sum(out_f32, axis=-1), 1.0, atol=1e-5)

    # 2) unpadded (masked-store) output variant — the v5e A/B alternative — exact path
    out_unpadded = jax.block_until_ready(
        actor_network_forward(obs, params, matmul_dtype=jnp.float32, approx_recip=False,
                              lane_dense_output=False))
    assert out_unpadded.shape == (batch, out_dim)
    assert jnp.allclose(out_unpadded, ref, atol=1e-5, rtol=1e-5), "unpadded path mismatch"

    # 3) default fast path (bf16 MXU operands, bf16 output, approx reciprocal): loose check
    out_fast = jax.block_until_ready(actor_network_forward(obs, params))
    assert out_fast.shape == (batch, out_dim)
    out_fast_f32 = out_fast.astype(jnp.float32)
    assert jnp.allclose(out_fast_f32, ref, atol=4e-2), "bf16 fast path outside tolerance"
    assert jnp.allclose(jnp.sum(out_fast_f32, axis=-1), 1.0, atol=2e-2)

    # 4) larger batch exercises the multi-step grid (>=2 tiles -> both v7x TCs) + padding
    big_b = 1000
    obs_big = jax.random.normal(jax.random.PRNGKey(1), (big_b, input_dim), jnp.float32)
    ref_big = actor_network_ref(obs_big, params)
    out_big = jax.block_until_ready(
        actor_network_forward(obs_big, params, matmul_dtype=jnp.float32, approx_recip=False))
    assert out_big.shape == (big_b, out_dim)
    assert jnp.allclose(out_big, ref_big, atol=1e-5, rtol=1e-5), "tiled path mismatch vs reference"

    print("KERNEL_OK")
</pallas_src>

<mosaic_0001>
module attributes {stable_mosaic.version = 11 : i64} {
  func.func @actor_kernel(%arg0: i32, %arg1: memref<8x32xf32, #tpu.memory_space<vmem>>, %arg2: memref<32x128xf32, #tpu.memory_space<vmem>>, %arg3: memref<1x128xf32, #tpu.memory_space<vmem>>, %arg4: memref<128x128xf32, #tpu.memory_space<vmem>>, %arg5: memref<1x128xf32, #tpu.memory_space<vmem>>, %arg6: memref<128x128xf32, #tpu.memory_space<vmem>>, %arg7: memref<1x128xf32, #tpu.memory_space<vmem>>, %arg8: memref<8x128xf32, #tpu.memory_space<vmem>>) attributes {dimension_semantics = [#tpu.dimension_semantics<parallel>], iteration_bounds = array<i64: 1>, scalar_prefetch = 0 : i64, scratch_operands = 0 : i64, tpu.core_type = #tpu.core_type<tc>, window_params = [{transform_indices = @transform_0, window_bounds = array<i64: 8, 32>}, {pipeline_mode = #tpu.pipeline_mode<synchronous>, transform_indices = @transform_1, window_bounds = array<i64: 32, 128>}, {pipeline_mode = #tpu.pipeline_mode<synchronous>, transform_indices = @transform_2, window_bounds = array<i64: 1, 128>}, {pipeline_mode = #tpu.pipeline_mode<synchronous>, transform_indices = @transform_3, window_bounds = array<i64: 128, 128>}, {pipeline_mode = #tpu.pipeline_mode<synchronous>, transform_indices = @transform_4, window_bounds = array<i64: 1, 128>}, {pipeline_mode = #tpu.pipeline_mode<synchronous>, transform_indices = @transform_5, window_bounds = array<i64: 128, 128>}, {pipeline_mode = #tpu.pipeline_mode<synchronous>, transform_indices = @transform_6, window_bounds = array<i64: 1, 128>}, {transform_indices = @transform_7, window_bounds = array<i64: 8, 128>}]} {
    %c0 = arith.constant 0 : index
    %c0_0 = arith.constant 0 : index
    %0 = vector.load %arg1[%c0, %c0_0] : memref<8x32xf32, #tpu.memory_space<vmem>>, vector<8x32xf32>
    %c0_1 = arith.constant 0 : index
    %c0_2 = arith.constant 0 : index
    %1 = vector.load %arg2[%c0_1, %c0_2] : memref<32x128xf32, #tpu.memory_space<vmem>>, vector<32x128xf32>
    %cst = arith.constant dense<0.000000e+00> : vector<8x128xf32>
    %2 = tpu.matmul %0, %1, %cst {dimension_numbers = #tpu.dot_dimension_numbers<[1], [0], [0], [1], [0, 0, 1, 1], [], []>} : vector<8x32xf32>, vector<32x128xf32>, vector<8x128xf32> -> vector<8x128xf32>
    %c0_3 = arith.constant 0 : index
    %c0_4 = arith.constant 0 : index
    %3 = vector.load %arg3[%c0_3, %c0_4] : memref<1x128xf32, #tpu.memory_space<vmem>>, vector<1x128xf32>
    %4 = vector.broadcast %3 : vector<1x128xf32> to vector<8x128xf32>
    %5 = arith.addf %2, %4 : vector<8x128xf32>
    %cst_5 = arith.constant 0.000000e+00 : f32
    %6 = vector.broadcast %cst_5 : f32 to vector<8x128xf32>
    %7 = arith.maximumf %5, %6 : vector<8x128xf32>
    %c0_6 = arith.constant 0 : index
    %c0_7 = arith.constant 0 : index
    %8 = vector.load %arg4[%c0_6, %c0_7] : memref<128x128xf32, #tpu.memory_space<vmem>>, vector<128x128xf32>
    %cst_8 = arith.constant dense<0.000000e+00> : vector<8x128xf32>
    %9 = tpu.matmul %7, %8, %cst_8 {dimension_numbers = #tpu.dot_dimension_numbers<[1], [0], [0], [1], [0, 0, 1, 1], [], []>} : vector<8x128xf32>, vector<128x128xf32>, vector<8x128xf32> -> vector<8x128xf32>
    %c0_9 = arith.constant 0 : index
    %c0_10 = arith.constant 0 : index
    %10 = vector.load %arg5[%c0_9, %c0_10] : memref<1x128xf32, #tpu.memory_space<vmem>>, vector<1x128xf32>
    %11 = vector.broadcast %10 : vector<1x128xf32> to vector<8x128xf32>
    %12 = arith.addf %9, %11 : vector<8x128xf32>
    %cst_11 = arith.constant 0.000000e+00 : f32
    %13 = vector.broadcast %cst_11 : f32 to vector<8x128xf32>
    %14 = arith.maximumf %12, %13 : vector<8x128xf32>
    %c0_12 = arith.constant 0 : index
    %c0_13 = arith.constant 0 : index
    %15 = vector.load %arg6[%c0_12, %c0_13] : memref<128x128xf32, #tpu.memory_space<vmem>>, vector<128x128xf32>
    %cst_14 = arith.constant dense<0.000000e+00> : vector<8x128xf32>
    %16 = tpu.matmul %14, %15, %cst_14 {dimension_numbers = #tpu.dot_dimension_numbers<[1], [0], [0], [1], [0, 0, 1, 1], [], []>} : vector<8x128xf32>, vector<128x128xf32>, vector<8x128xf32> -> vector<8x128xf32>
    %c0_15 = arith.constant 0 : index
    %c0_16 = arith.constant 0 : index
    %17 = vector.load %arg7[%c0_15, %c0_16] : memref<1x128xf32, #tpu.memory_space<vmem>>, vector<1x128xf32>
    %18 = vector.broadcast %17 : vector<1x128xf32> to vector<8x128xf32>
    %19 = arith.addf %16, %18 : vector<8x128xf32>
    %cst_17 = arith.constant dense<0xFF800000> : vector<8xf32>
    %20 = vector.multi_reduction <maximumf>, %19, %cst_17 [1] : vector<8x128xf32> to vector<8xf32>
    %21 = vector.shape_cast %20 : vector<8xf32> to vector<8x1xf32>
    %22 = vector.broadcast %21 : vector<8x1xf32> to vector<8x128xf32>
    %23 = arith.subf %19, %22 : vector<8x128xf32>
    %24 = math.exp %23 : vector<8x128xf32>
    %cst_18 = arith.constant dense<0.000000e+00> : vector<8xf32>
    %25 = vector.multi_reduction <add>, %24, %cst_18 [1] : vector<8x128xf32> to vector<8xf32>
    %26 = vector.shape_cast %25 : vector<8xf32> to vector<8x1xf32>
    %27 = tpu.reciprocal %26 : vector<8x1xf32> -> vector<8x1xf32>
    %28 = vector.broadcast %27 : vector<8x1xf32> to vector<8x128xf32>
    %29 = arith.mulf %24, %28 : vector<8x128xf32>
    %c0_19 = arith.constant 0 : index
    %c0_20 = arith.constant 0 : index
    %30 = vector.load %arg8[%c0_19, %c0_20] : memref<8x128xf32, #tpu.memory_space<vmem>>, vector<8x128xf32>
    tpu.vector_store %arg8[%c0_19, %c0_20], %29 {strides = array<i32>} : memref<8x128xf32, #tpu.memory_space<vmem>>, vector<8x128xf32>,
    return
  }
  func.func @transform_0(%arg0: i32) -> (i32, i32) {
    %c0_i32 = arith.constant 0 : i32
    %c0_i32_0 = arith.constant 0 : i32
    return %arg0, %c0_i32 : i32, i32
  }
  func.func @transform_1(%arg0: i32) -> (i32, i32) {
    %c0_i32 = arith.constant 0 : i32
    %c0_i32_0 = arith.constant 0 : i32
    %c0_i32_1 = arith.constant 0 : i32
    return %c0_i32, %c0_i32_0 : i32, i32
  }
  func.func @transform_2(%arg0: i32) -> (i32, i32) {
    %c0_i32 = arith.constant 0 : i32
    %c0_i32_0 = arith.constant 0 : i32
    %c0_i32_1 = arith.constant 0 : i32
    return %c0_i32, %c0_i32_0 : i32, i32
  }
  func.func @transform_3(%arg0: i32) -> (i32, i32) {
    %c0_i32 = arith.constant 0 : i32
    %c0_i32_0 = arith.constant 0 : i32
    %c0_i32_1 = arith.constant 0 : i32
    return %c0_i32, %c0_i32_0 : i32, i32
  }
  func.func @transform_4(%arg0: i32) -> (i32, i32) {
    %c0_i32 = arith.constant 0 : i32
    %c0_i32_0 = arith.constant 0 : i32
    %c0_i32_1 = arith.constant 0 : i32
    return %c0_i32, %c0_i32_0 : i32, i32
  }
  func.func @transform_5(%arg0: i32) -> (i32, i32) {
    %c0_i32 = arith.constant 0 : i32
    %c0_i32_0 = arith.constant 0 : i32
    %c0_i32_1 = arith.constant 0 : i32
    return %c0_i32, %c0_i32_0 : i32, i32
  }
  func.func @transform_6(%arg0: i32) -> (i32, i32) {
    %c0_i32 = arith.constant 0 : i32
    %c0_i32_0 = arith.constant 0 : i32
    %c0_i32_1 = arith.constant 0 : i32
    return %c0_i32, %c0_i32_0 : i32, i32
  }
  func.func @transform_7(%arg0: i32) -> (i32, i32) {
    %c0_i32 = arith.constant 0 : i32
    %c0_i32_0 = arith.constant 0 : i32
    return %arg0, %c0_i32 : i32, i32
  }
}

</mosaic_0001>

<llo_original>
// kernel: tpu_custom_call.1
$region0: #{tpu_custom_call.1}
  #allocation0 [shape = 'u32[]', space=smem, size = 0x4, offset = 0x4, fixed_abs, tag = 'smem constant byte address 0x4 - core index']
  #allocation1 [shape = 'u32[72,128]{1,0:T(1,128)}', space=vmem, size = 0x9000, scoped, tag = 'internal scratch']
  %s0 = inlined_call_operand.hbm [shape: f32[8,32], index: 0, kind: input, shape index: {}]
  %s1 = inlined_call_operand.hbm [shape: f32[32,128], index: 1, kind: input, shape index: {}]
  %s2 = inlined_call_operand.vmem [shape: f32[1,128], index: 2, kind: input, shape index: {}]
  %s3 = inlined_call_operand.hbm [shape: f32[128,128], index: 3, kind: input, shape index: {}]
  %s4 = inlined_call_operand.vmem [shape: f32[1,128], index: 4, kind: input, shape index: {}]
  %s5 = inlined_call_operand.hbm [shape: f32[128,128], index: 5, kind: input, shape index: {}]
  %s6 = inlined_call_operand.vmem [shape: f32[1,128], index: 6, kind: input, shape index: {}]
  %s7 = inlined_call_operand.hbm [shape: f32[8,128], index: 7, kind: output, shape index: {}]
  %s8 = sld [smem:[#allocation0]]
  $region54: #{tpu_custom_call.1} parent=0
    _
  %s10 = ssub.s32 1, %s8
  %s11 = scalar_select 0, %s10, %s8
  $region1: #{tpu_custom_call.1} parent=0
    #allocation2 [shape = 'u8[4096]{0}', space=vmem, size = 0x1000, scoped, tag = 'input window, operand 0, single buffered']
    #allocation3 [shape = 's32[1]{0}', space=sflag, size = 0x4, scoped, tag = 'scoped memory for tpu_custom_call.1']
    #allocation4 [shape = 's32[1]{0}', space=sflag, size = 0x4, scoped, tag = 'scoped memory for tpu_custom_call.1']
    #allocation5 [shape = 'u8[16384]{0}', space=vmem, size = 0x4000, scoped, tag = 'input window, operand 1, single buffered']
    #allocation6 [shape = 's32[1]{0}', space=sflag, size = 0x4, scoped, tag = 'scoped memory for tpu_custom_call.1']
    #allocation7 [shape = 'u8[65536]{0}', space=vmem, size = 0x10000, scoped, tag = 'input window, operand 3, single buffered']
    #allocation8 [shape = 'u8[65536]{0}', space=vmem, size = 0x10000, scoped, tag = 'input window, operand 5, single buffered']
    #allocation9 [shape = 's32[1]{0}', space=sflag, size = 0x4, scoped, tag = 'scoped memory for tpu_custom_call.1']
    #allocation10 [shape = 'u8[4096]{0}', space=vmem, size = 0x1000, scoped, tag = 'output window, operand 0, single buffered']
    %12 = vsyncpa [#allocation3], 0
    %13 = vsyncpa [#allocation6], 0
    %14 = vsyncpa [#allocation9], 0
    %15 = vsyncpa [#allocation4], 0
    // Predicated region
    $region2: #{tpu_custom_call.1} parent=1 // pred_check
      _
    $region3: #{tpu_custom_call.1} parent=1 // pred_check_branch
      %17 = sbr.rel (0) target = $region5
    $region4: #{tpu_custom_call.1} parent=1 // pred_region
      %19 = vsyncadd [#allocation3], 0
      %s21 = sshll.u32 %s0, 4
      %s22 = int_to_ptr.hbm [resolvable:$true] %s21
      %s23 = sshll.u32 [#allocation2], 4
      %s24 = int_to_ptr.vmem [resolvable:$true] %s23
      %26 = dma.hbm_to_vmem [thread:$0]  %s22, 128, %s24, [#allocation3]
    $region5: #{tpu_custom_call.1} parent=1 // pred_fallthru
      _
    // Predicated region
    $region6: #{tpu_custom_call.1} parent=1 // pred_check
      _
    $region7: #{tpu_custom_call.1} parent=1 // pred_check_branch
      %28 = sbr.rel (0) target = $region9
    $region8: #{tpu_custom_call.1} parent=1 // pred_region
      %30 = vsyncadd [#allocation6], 0
      %s31 = sshll.u32 %s1, 4
      %s32 = int_to_ptr.hbm [resolvable:$true] %s31
      %s33 = sshll.u32 [#allocation5], 4
      %s34 = int_to_ptr.vmem [resolvable:$true] %s33
      %39 = dma.hbm_to_vmem [thread:$0]  %s32, 512, %s34, [#allocation6], 128, 128, 8
    $region9: #{tpu_custom_call.1} parent=1 // pred_fallthru
      _
    // Predicated region
    $region10: #{tpu_custom_call.1} parent=1 // pred_check
      _
    $region11: #{tpu_custom_call.1} parent=1 // pred_check_branch
      %41 = sbr.rel (0) target = $region13
    $region12: #{tpu_custom_call.1} parent=1 // pred_region
      _
    $region13: #{tpu_custom_call.1} parent=1 // pred_fallthru
      _
    // Predicated region
    $region14: #{tpu_custom_call.1} parent=1 // pred_check
      _
    $region15: #{tpu_custom_call.1} parent=1 // pred_check_branch
      %43 = sbr.rel (0) target = $region17
    $region16: #{tpu_custom_call.1} parent=1 // pred_region
      %45 = vsyncadd [#allocation6], 0
      %s46 = sshll.u32 %s3, 4
      %s47 = int_to_ptr.hbm [resolvable:$true] %s46
      %s48 = sshll.u32 [#allocation7], 4
      %s49 = int_to_ptr.vmem [resolvable:$true] %s48
      %54 = dma.hbm_to_vmem [thread:$0]  %s47, 2048, %s49, [#allocation6], 128, 128, 8
    $region17: #{tpu_custom_call.1} parent=1 // pred_fallthru
      _
    // Predicated region
    $region18: #{tpu_custom_call.1} parent=1 // pred_check
      _
    $region19: #{tpu_custom_call.1} parent=1 // pred_check_branch
      %56 = sbr.rel (0) target = $region21
    $region20: #{tpu_custom_call.1} parent=1 // pred_region
      _
    $region21: #{tpu_custom_call.1} parent=1 // pred_fallthru
      _
    // Predicated region
    $region22: #{tpu_custom_call.1} parent=1 // pred_check
      _
    $region23: #{tpu_custom_call.1} parent=1 // pred_check_branch
      %58 = sbr.rel (0) target = $region25
    $region24: #{tpu_custom_call.1} parent=1 // pred_region
      %60 = vsyncadd [#allocation9], 0
      %s61 = sshll.u32 %s5, 4
      %s62 = int_to_ptr.hbm [resolvable:$true] %s61
      %s63 = sshll.u32 [#allocation8], 4
      %s64 = int_to_ptr.vmem [resolvable:$true] %s63
      %69 = dma.hbm_to_vmem [thread:$0]  %s62, 2048, %s64, [#allocation9], 128, 128, 8
    $region25: #{tpu_custom_call.1} parent=1 // pred_fallthru
      _
    // Predicated region
    $region26: #{tpu_custom_call.1} parent=1 // pred_check
      _
    $region27: #{tpu_custom_call.1} parent=1 // pred_check_branch
      %71 = sbr.rel (0) target = $region29
    $region28: #{tpu_custom_call.1} parent=1 // pred_region
      _
    $region29: #{tpu_custom_call.1} parent=1 // pred_fallthru
      _
    // Predicated region
    $region30: #{tpu_custom_call.1} parent=1 // pred_check
      _
    $region31: #{tpu_custom_call.1} parent=1 // pred_check_branch
      %73 = sbr.rel (0) target = $region33
    $region32: #{tpu_custom_call.1} parent=1 // pred_region
      %75 = dma.done [#allocation3], 128
    $region33: #{tpu_custom_call.1} parent=1 // pred_fallthru
      _
    // Predicated region
    $region34: #{tpu_custom_call.1} parent=1 // pred_check
      _
    $region35: #{tpu_custom_call.1} parent=1 // pred_check_branch
      %77 = sbr.rel (0) target = $region37
    $region36: #{tpu_custom_call.1} parent=1 // pred_region
      %79 = dma.done [#allocation6], 512
    $region37: #{tpu_custom_call.1} parent=1 // pred_fallthru
      _
    // Predicated region
    $region38: #{tpu_custom_call.1} parent=1 // pred_check
      _
    $region39: #{tpu_custom_call.1} parent=1 // pred_check_branch
      %81 = sbr.rel (0) target = $region41
    $region40: #{tpu_custom_call.1} parent=1 // pred_region
      %83 = dma.done [#allocation6], 2048
    $region41: #{tpu_custom_call.1} parent=1 // pred_fallthru
      _
    // Predicated region
    $region42: #{tpu_custom_call.1} parent=1 // pred_check
      _
    $region43: #{tpu_custom_call.1} parent=1 // pred_check_branch
      %85 = sbr.rel (0) target = $region45
    $region44: #{tpu_custom_call.1} parent=1 // pred_region
      %87 = dma.done [#allocation9], 2048
    $region45: #{tpu_custom_call.1} parent=1 // pred_fallthru
      _
    %v88 = vld [vmem:[#allocation2] sm:$0xff]
    %v89 = vld [vmem:[#allocation5] sm:$0xff]
    %v90 = vld [vmem:[#allocation5 + $0x8] sm:$0xff]
    %v91 = vld [vmem:[#allocation5 + $0x10] sm:$0xff]
    %v92 = vld [vmem:[#allocation5 + $0x18] sm:$0xff]
    %v93 = vld [vmem:[%s2] sm:$0x1]
    %v95 = vperm.slane %v93, 0
    %vm97 = vcmask 261120
    %v99 = vsel %vm97, %v88, 0
    %101 = vmatpush.msra.mxu0 0.0
    %102 = vmatpush.msra.mxu0 0.0
    %103 = vmatpush.msra.mxu0 0.0
    %104 = vmatpush.msra.mxu0 0.0
    %105 = vmatpush.msra.mxu0 0.0
    %106 = vmatpush.msra.mxu0 0.0
    %107 = vmatpush.msra.mxu0 0.0
    %108 = vmatpush.msra.mxu0 0.0
    %109 = vmatpush.msra.mxu0 0.0
    %110 = vmatpush.msra.mxu0 0.0
    %111 = vmatpush.msra.mxu0 0.0
    %112 = vmatpush.msra.mxu0 0.0
    %113 = vmatpush.msra.mxu0 %v92
    %114 = vmatpush.msra.mxu0 %v91
    %115 = vmatpush.msra.mxu0 %v90
    %116 = vmatpush.msra.mxu0 %v89
    %117 = vmatmul.f32.gmra.mxu0 %v99
    %v118 = vpop.f32.mrf.mxu0
    %v119 = vadd.f32 %v95, %v118
    %120 = vdwg.mxu0
    %v121 = vmax.f32 %v119, 0.0
    %v122 = vld [vmem:[#allocation7] sm:$0xff]
    %v123 = vld [vmem:[#allocation7 + $0x8] sm:$0xff]
    %v124 = vld [vmem:[#allocation7 + $0x10] sm:$0xff]
    %v125 = vld [vmem:[#allocation7 + $0x18] sm:$0xff]
    %v126 = vld [vmem:[#allocation7 + $0x20] sm:$0xff]
    %v127 = vld [vmem:[#allocation7 + $0x28] sm:$0xff]
    %v128 = vld [vmem:[#allocation7 + $0x30] sm:$0xff]
    %v129 = vld [vmem:[#allocation7 + $0x38] sm:$0xff]
    %v130 = vld [vmem:[#allocation7 + $0x40] sm:$0xff]
    %v131 = vld [vmem:[#allocation7 + $0x48] sm:$0xff]
    %v132 = vld [vmem:[#allocation7 + $0x50] sm:$0xff]
    %v133 = vld [vmem:[#allocation7 + $0x58] sm:$0xff]
    %v134 = vld [vmem:[#allocation7 + $0x60] sm:$0xff]
    %v135 = vld [vmem:[#allocation7 + $0x68] sm:$0xff]
    %v136 = vld [vmem:[#allocation7 + $0x70] sm:$0xff]
    %v137 = vld [vmem:[#allocation7 + $0x78] sm:$0xff]
    %v138 = vld [vmem:[%s4] sm:$0x1]
    %v140 = vperm.slane %v138, 0
    %142 = vmatpush.msra.mxu0 %v137
    %143 = vmatpush.msra.mxu0 %v136
    %144 = vmatpush.msra.mxu0 %v135
    %145 = vmatpush.msra.mxu0 %v134
    %146 = vmatpush.msra.mxu0 %v133
    %147 = vmatpush.msra.mxu0 %v132
    %148 = vmatpush.msra.mxu0 %v131
    %149 = vmatpush.msra.mxu0 %v130
    %150 = vmatpush.msra.mxu0 %v129
    %151 = vmatpush.msra.mxu0 %v128
    %152 = vmatpush.msra.mxu0 %v127
    %153 = vmatpush.msra.mxu0 %v126
    %154 = vmatpush.msra.mxu0 %v125
    %155 = vmatpush.msra.mxu0 %v124
    %156 = vmatpush.msra.mxu0 %v123
    %157 = vmatpush.msra.mxu0 %v122
    %158 = vmatmul.f32.gmra.mxu0 %v121
    %v159 = vpop.f32.mrf.mxu0
    %v160 = vadd.f32 %v140, %v159
    %161 = vdwg.mxu0
    %v162 = vmax.f32 %v160, 0.0
    %v163 = vld [vmem:[#allocation8] sm:$0xff]
    %v164 = vld [vmem:[#allocation8 + $0x8] sm:$0xff]
    %v165 = vld [vmem:[#allocation8 + $0x10] sm:$0xff]
    %v166 = vld [vmem:[#allocation8 + $0x18] sm:$0xff]
    %v167 = vld [vmem:[#allocation8 + $0x20] sm:$0xff]
    %v168 = vld [vmem:[#allocation8 + $0x28] sm:$0xff]
    %v169 = vld [vmem:[#allocation8 + $0x30] sm:$0xff]
    %v170 = vld [vmem:[#allocation8 + $0x38] sm:$0xff]
    %v171 = vld [vmem:[#allocation8 + $0x40] sm:$0xff]
    %v172 = vld [vmem:[#allocation8 + $0x48] sm:$0xff]
    %v173 = vld [vmem:[#allocation8 + $0x50] sm:$0xff]
    %v174 = vld [vmem:[#allocation8 + $0x58] sm:$0xff]
    %v175 = vld [vmem:[#allocation8 + $0x60] sm:$0xff]
    %v176 = vld [vmem:[#allocation8 + $0x68] sm:$0xff]
    %v177 = vld [vmem:[#allocation8 + $0x70] sm:$0xff]
    %v178 = vld [vmem:[#allocation8 + $0x78] sm:$0xff]
    %v179 = vld [vmem:[%s6] sm:$0x1]
    %v181 = vperm.slane %v179, 0
    %183 = vmatpush.msra.mxu0 %v178
    %184 = vmatpush.msra.mxu0 %v177
    %185 = vmatpush.msra.mxu0 %v176
    %186 = vmatpush.msra.mxu0 %v175
    %187 = vmatpush.msra.mxu0 %v174
    %188 = vmatpush.msra.mxu0 %v173
    %189 = vmatpush.msra.mxu0 %v172
    %190 = vmatpush.msra.mxu0 %v171
    %191 = vmatpush.msra.mxu0 %v170
    %192 = vmatpush.msra.mxu0 %v169
    %193 = vmatpush.msra.mxu0 %v168
    %194 = vmatpush.msra.mxu0 %v167
    %195 = vmatpush.msra.mxu0 %v166
    %196 = vmatpush.msra.mxu0 %v165
    %197 = vmatpush.msra.mxu0 %v164
    %198 = vmatpush.msra.mxu0 %v163
    %199 = vmatmul.f32.gmra.mxu0 %v162
    %v200 = vpop.f32.mrf.mxu0
    %v201 = vadd.f32 %v181, %v200
    %202 = vdwg.mxu0
    %203 = vmax.xlane.f32.xlu0 %v201
    %v204 = vpop.xlane.xlu0 %203
    %v205 = vsub.f32 %v201, %v204
    %v206 = vmul.f32 %v205, 1.442695
    %v207 = vpow.pop %v206
    %208 = vadd.xlane.f32.xlu0 %v207
    %v209 = vpop.xlane.xlu0 %208
    %v210 = vrcp.pop %v209
    %v211 = vmul.f32 %v209, %v210
    %v212 = vsub.f32 1.0, %v211
    %v213 = vmul.f32 %v210, %v212
    %v214 = vadd.f32 %v210, %v213
    %vm215 = vweird.f32 %v209
    %vm216 = vweird.f32 %v210
    %vm217 = vmor %vm215, %vm216
    %v218 = vsel %vm217, %v210, %v214
    %v219 = vand.u32 2147483647, %v209
    %vm220 = vcmp.eq.f32.partialorder %v219, 8.507059e+37
    %v221 = vand.u32 %v209, 2147483648
    %v222 = vor.u32 1.1754944e-38, %v221
    %v223 = vsel %vm220, %v222, %v218
    %v224 = vmul.f32 %v207, %v223
    %225 = vst [vmem:[#allocation10] sm:$0xff] %v224
    // Predicated region
    $region46: #{tpu_custom_call.1} parent=1 // pred_check
      _
    $region47: #{tpu_custom_call.1} parent=1 // pred_check_branch
      %227 = sbr.rel (0) target = $region49
    $region48: #{tpu_custom_call.1} parent=1 // pred_region
      %229 = vsyncadd [#allocation4], 0
      %s231 = sshll.u32 [#allocation10], 4
      %s232 = int_to_ptr.vmem [resolvable:$true] %s231
      %s233 = sshll.u32 %s7, 4
      %s234 = int_to_ptr.hbm [resolvable:$true] %s233
      %236 = dma.vmem_to_hbm [thread:$0]  %s232, 128, %s234, [#allocation4]
    $region49: #{tpu_custom_call.1} parent=1 // pred_fallthru
      _
    // Predicated region
    $region50: #{tpu_custom_call.1} parent=1 // pred_check
      _
    $region51: #{tpu_custom_call.1} parent=1 // pred_check_branch
      %238 = sbr.rel (0) target = $region53
    $region52: #{tpu_custom_call.1} parent=1 // pred_region
      %240 = dma.done [#allocation4], 128
    $region53: #{tpu_custom_call.1} parent=1 // pred_fallthru
      _
    %241 = vsyncpa [#allocation3], 1
    %242 = vsyncpa [#allocation6], 1
    %243 = vsyncpa [#allocation9], 1
    %244 = vsyncpa [#allocation4], 1

</llo_original>
